<compile_context>
chip_gen: v7x
topology: tpu7x:2x2x1
jax: 0.10.0
libtpu: 0.0.40
codegen_flags: <defaults>
</compile_context>

<pallas_src>
import functools
import math

import jax
import jax.numpy as jnp
from jax import lax
from jax.experimental import pallas as pl
from jax.experimental.pallas import tpu as pltpu

_MIB = 1024 * 1024
# Explicit scoped-VMEM limit: <= ~56 MiB is safe on v7x (64 MiB physical) and well
# within v5e/v6e's 128 MiB physical (their 16/32 MiB scoped defaults are raised).
_VMEM_LIMIT = 56 * _MIB
_W_BUDGET = 8 * _MIB       # budget for a single resident weight block (one copy)
_ACT_CAP = 32 * _MIB       # cap for double-buffered activation blocks


def _round_up(x, m):
    return (x + m - 1) // m * m


def _act_budget(resident_alloc_bytes):
    """VMEM left for double-buffered activation blocks after resident weights."""
    return int(max(2 * _MIB,
                   min(_ACT_CAP, _VMEM_LIMIT - resident_alloc_bytes - 4 * _MIB)))


@functools.cache
def _single_buffer_mode():
    """pl.Buffered(1) if this JAX/Mosaic supports single-buffered BlockSpecs, else None."""
    try:
        def _probe(x_ref, o_ref):
            o_ref[...] = x_ref[...] + 1.0

        f = pl.pallas_call(
            _probe,
            out_shape=jax.ShapeDtypeStruct((8, 128), jnp.float32),
            grid=(2,),
            in_specs=[pl.BlockSpec((8, 128), lambda i: (0, 0),
                                   pipeline_mode=pl.Buffered(buffer_count=1))],
            out_specs=pl.BlockSpec((8, 128), lambda i: (0, 0)),
        )
        jax.block_until_ready(f(jnp.zeros((8, 128), jnp.float32)))
        return pl.Buffered(buffer_count=1)
    except Exception:
        return None


def _resident_spec(block_shape, index_map):
    """BlockSpec for a block whose index never changes: single-buffer it if possible
    (halves its VMEM footprint vs the default double-buffering)."""
    mode = _single_buffer_mode()
    if mode is None:
        return pl.BlockSpec(block_shape, index_map)
    return pl.BlockSpec(block_shape, index_map, pipeline_mode=mode)


@functools.cache
def _num_tensorcores():
    """Best-effort TensorCore count (v7x has 2 per chip); falls back to 1."""
    try:
        info = pltpu.get_tpu_info()
        for attr in ("num_cores", "core_count", "num_tensorcores", "tensorcore_count"):
            v = getattr(info, attr, None)
            if isinstance(v, int) and v > 0:
                return v
    except Exception:
        pass
    return 1


# --------------------------------------------------------------------------
# (1) Input projection: (M, D) @ (D, 3Hp) + bias, tiled over rows and gate dim
# --------------------------------------------------------------------------
def _input_proj_kernel(x_ref, w_ref, b_ref, gi_ref):
    x = x_ref[...].astype(jnp.bfloat16)                               # bf16 for the MXU
    acc = jnp.dot(x, w_ref[...], preferred_element_type=jnp.float32)  # f32 accumulate
    gi_ref[...] = (acc + b_ref[...]).astype(gi_ref.dtype)             # folded bias, bf16 out


def _input_projection(x2, wihT, b_proj):
    M, Din = x2.shape
    Gp = wihT.shape[-1]
    Hp = Gp // 3

    # Gate-dim tile: keep each weight block within budget (critical for v7x's 64 MiB).
    if Din * Gp * 2 <= _W_BUDGET:
        Gt = Gp                                   # whole W_ih^T resident
    else:
        Gt = Hp
        while Gt > 128 and (Din * Gt * 2 > _W_BUDGET or Gp % Gt != 0):
            Gt -= 128
    # TODO(synk): for very large Din also tile the contraction dim (extra "arbitrary"
    # grid axis + f32 accumulator scratch) instead of keeping full-D row blocks.

    # Row block: as large as the remaining budget allows (amortizes weight DMA and
    # the ~0.35us per-grid-step overhead).
    budget = _act_budget(2 * Din * Gt * 2)                       # worst-case dbl-buffered weight
    per_row = 2 * Din * x2.dtype.itemsize + 2 * Gt * 2           # dbl-buffered x + bf16 gi rows
    R = max(8, min(1024, (budget // per_row) // 8 * 8))
    R = min(R, _round_up(M, 8))
    Mp = _round_up(M, R)
    if Mp != M:
        x2 = jnp.pad(x2, ((0, Mp - M), (0, 0)))                  # zero rows, sliced off below

    n_g = Gp // Gt
    w_index = lambda g, m: (0, g)
    w_spec = (_resident_spec((Din, Gt), w_index) if n_g == 1
              else pl.BlockSpec((Din, Gt), w_index))

    gi = pl.pallas_call(
        _input_proj_kernel,
        out_shape=jax.ShapeDtypeStruct((Mp, Gp), jnp.bfloat16),
        grid_spec=pltpu.PrefetchScalarGridSpec(
            num_scalar_prefetch=0,
            grid=(n_g, Mp // R),                   # gate tiles outer -> weight tile reused over rows
            in_specs=[
                pl.BlockSpec((R, Din), lambda g, m: (m, 0)),     # x rows
                w_spec,                                          # W_ih^T tile
                pl.BlockSpec((1, Gt), lambda g, m: (0, g)),      # folded bias
            ],
            out_specs=pl.BlockSpec((R, Gt), lambda g, m: (m, g)),
        ),
        compiler_params=pltpu.CompilerParams(
            dimension_semantics=("parallel", "parallel"),
            vmem_limit_bytes=_VMEM_LIMIT),
    )(x2, wihT, b_proj)
    return gi[:M] if Mp != M else gi


# --------------------------------------------------------------------------
# (2) Recurrence: C time steps per grid iteration, hidden carried in VMEM
# --------------------------------------------------------------------------
def _gru_recurrence_kernel(gi_ref, h0_ref, whh_ref, bhn_ref, out_ref, h_scratch,
                           *, hidden_size, chunk):
    Hp = hidden_size
    s = pl.program_id(1)                           # time-chunk index ("arbitrary", innermost)

    @pl.when(s == 0)
    def _():                                       # fresh batch block: load its h0
        h_scratch[...] = h0_ref[...].astype(jnp.float32)

    whh = whh_ref[...]                             # (Hp, 3Hp) bf16, VMEM-resident
    bhn = bhn_ref[...]                             # (1, Hp) f32 (only b_hn is gated by r)

    def step(c, h):
        # Load ONE step's pre-activations (bounded vreg pressure; the vld overlaps
        # the MXU dependency chain instead of spilling a whole (C,Bt,3Hp) slab).
        gi_c = gi_ref[c].astype(jnp.float32)                        # (Bt, 3Hp)
        gh = jnp.dot(h.astype(jnp.bfloat16), whh,
                     preferred_element_type=jnp.float32)            # (Bt, 3Hp)
        rz = jax.nn.sigmoid(gi_c[:, :2 * Hp] + gh[:, :2 * Hp])      # fused r|z sigmoid
        r = rz[:, :Hp]
        z = rz[:, Hp:]
        n = jnp.tanh(gi_c[:, 2 * Hp:] + r * (gh[:, 2 * Hp:] + bhn))
        h_new = n + z * (h - n)                                     # (1-z)*n + z*h
        out_ref[c] = h_new.astype(out_ref.dtype)                    # dense (Bt, Hp) store
        return h_new

    # chunk is always a multiple of 8; fori_loop bounds live ranges, the unroll
    # factor keeps LLO scheduler visibility without exploding code size.
    h = lax.fori_loop(0, chunk, step, h_scratch[...], unroll=8)
    h_scratch[...] = h
    # TODO(synk): for very large Hp, stage W_hh^T on the MXU once per chunk via
    # pltpu.matmul_push_rhs / matmul_acc_lhs / matmul_pop instead of jnp.dot per step.


def _pick_time_chunk(T, Bt, Hp, out_itemsize):
    """Largest time chunk C (multiple of 8) whose double-buffered gi/out blocks fit VMEM."""
    Gp = 3 * Hp
    budget = _act_budget(2 * Hp * Gp * 2)                 # resident W_hh^T (worst: dbl-buffered)
    per_step = 2 * (Bt * Gp * 2) + 2 * (Bt * Hp * out_itemsize)   # bf16 gi + out, both dbl-buffered
    c = (budget // per_step) // 8 * 8
    c = max(8, min(c, 256))
    return min(c, _round_up(T, 8))


def _prepare_layer_weights(w_ih, w_hh, b_ih, b_hh, H, Hp, Din, Dinp):
    """Pad each r|z|n gate block from H to Hp (and input dims to Dinp/Hp), build bf16
    transposed weights and folded biases.  Padded rows/cols are zero, so padded hidden
    units stay exactly 0 through the recurrence and never affect real lanes."""
    def pad_gate_rows(w, cols_to):            # (3H, X) -> (3Hp, cols_to)
        blocks = [jnp.pad(w[g * H:(g + 1) * H], ((0, Hp - H), (0, 0))) for g in range(3)]
        w = jnp.concatenate(blocks, axis=0)
        return jnp.pad(w, ((0, 0), (0, cols_to - w.shape[1])))

    def pad_gate_vec(b):                      # (3H,) -> (3Hp,)
        return jnp.concatenate([jnp.pad(b[g * H:(g + 1) * H], (0, Hp - H)) for g in range(3)])

    wihT = pad_gate_rows(w_ih, Dinp).T.astype(jnp.bfloat16)      # (Dinp, 3Hp)
    whhT = pad_gate_rows(w_hh, Hp).T.astype(jnp.bfloat16)        # (Hp, 3Hp)
    b_ih_p, b_hh_p = pad_gate_vec(b_ih), pad_gate_vec(b_hh)
    # Fold b_hh's r/z parts into the projection bias; only b_hn stays in the recurrence
    # (it is gated by r).
    b_proj = (b_ih_p + jnp.concatenate([b_hh_p[:2 * Hp], jnp.zeros((Hp,), b_hh_p.dtype)])
              ).reshape(1, 3 * Hp).astype(jnp.float32)
    b_hn = b_hh_p[2 * Hp:].reshape(1, Hp).astype(jnp.float32)
    return wihT, whhT, b_proj, b_hn


def _gru_layer(xt, h0, layer_w, *, Hp, Bt, C, out_dtype):
    """One GRU layer over a padded time-major sequence (Tp, Bp, Dinp) -> (Tp, Bp, Hp)."""
    wihT, whhT, b_proj, b_hn = layer_w
    Tp, Bp, Dinp = xt.shape
    Gp = 3 * Hp

    # ---- (1) input projection for the whole sequence: one big GEMM, bf16 output ----
    gi = _input_projection(xt.reshape(Tp * Bp, Dinp), wihT, b_proj).reshape(Tp, Bp, Gp)

    # ---- (2) sequential recurrence --------------------------------------------------
    n_b, n_t = Bp // Bt, Tp // C
    kernel = functools.partial(_gru_recurrence_kernel, hidden_size=Hp, chunk=C)
    return pl.pallas_call(
        kernel,
        out_shape=jax.ShapeDtypeStruct((Tp, Bp, Hp), out_dtype),
        grid_spec=pltpu.PrefetchScalarGridSpec(
            num_scalar_prefetch=0,
            grid=(n_b, n_t),                                    # batch blocks x time chunks
            in_specs=[
                pl.BlockSpec((C, Bt, Gp), lambda b, s: (s, b, 0)),   # gi chunk (bf16)
                pl.BlockSpec((Bt, Hp), lambda b, s: (b, 0)),         # h0 (read at s==0)
                _resident_spec((Hp, Gp), lambda b, s: (0, 0)),       # W_hh^T, single-buffered
                _resident_spec((1, Hp), lambda b, s: (0, 0)),        # b_hn
            ],
            out_specs=pl.BlockSpec((C, Bt, Hp), lambda b, s: (s, b, 0)),
            scratch_shapes=[pltpu.VMEM((Bt, Hp), jnp.float32)],      # hidden carry
        ),
        compiler_params=pltpu.CompilerParams(
            dimension_semantics=("parallel", "arbitrary"),  # batch parallel (v7x), time sequential
            vmem_limit_bytes=_VMEM_LIMIT),
    )(gi, h0, whhT, b_hn)


def gru_forward(x, h0, params):
    """Multi-layer GRU forward: (out, h) like torch.nn.GRU(batch_first=True)."""
    # TODO(synk): bidirectional=True variant not implemented (module default is False).
    B, T, D = x.shape
    H = h0.shape[-1]
    Hp = _round_up(H, 128)        # lane-dense gates/hidden: no masked vst, no tile-crossing slices
    Bp = _round_up(B, 8)          # full f32 sublanes
    Dp = _round_up(D, 128)

    # Batch-parallel recurrence axis: lets v7x's two TensorCores both work on the
    # sequential phase.  Only split when it cannot hurt a single-TC chip (per-step
    # MXU M-dim stays >=256) or when a 2nd core is actually detected.
    n_b = 1
    if Bp % 16 == 0 and (Bp >= 512 or (_num_tensorcores() >= 2 and Bp >= 16)):
        n_b = 2
    Bt = Bp // n_b

    C = _pick_time_chunk(T, Bt, Hp, x.dtype.itemsize)   # VMEM-budget-driven time chunk
    Tp = _round_up(T, C)

    # Time-major layout so the recurrence reads/writes contiguous (Bt, Hp) tiles with a
    # dynamic index on the (untiled) leading time axis.
    xt = jnp.transpose(x, (1, 0, 2))
    xt = jnp.pad(xt, ((0, Tp - T), (0, Bp - B), (0, Dp - D)))
    h0p = jnp.pad(h0, ((0, 0), (0, Bp - B), (0, Hp - H)))

    hs, inp = [], xt
    for layer, (w_ih, w_hh, b_ih, b_hh) in enumerate(params):
        din, dinp = (D, Dp) if layer == 0 else (H, Hp)
        lw = _prepare_layer_weights(w_ih, w_hh, b_ih, b_hh, H, Hp, din, dinp)
        out_t = _gru_layer(inp, h0p[layer], lw, Hp=Hp, Bt=Bt, C=C, out_dtype=x.dtype)
        hs.append(out_t[T - 1, :B, :H])   # final hidden = last real step (f32; padded steps come after)
        inp = out_t                       # padded activations feed the next layer directly
    out = jnp.transpose(inp[:T, :B, :H], (1, 0, 2))
    return out, jnp.stack(hs, axis=0)


# --------------------------------------------------------------------------
# Pure-JAX reference (f32) for a correctness sanity check
# --------------------------------------------------------------------------
def gru_reference(x, h0, params):
    def one_layer(x, h, w_ih, w_hh, b_ih, b_hh):
        H = h.shape[-1]
        outs = []
        for t in range(x.shape[1]):
            gi = x[:, t, :] @ w_ih.T + b_ih
            gh = h @ w_hh.T + b_hh
            r = jax.nn.sigmoid(gi[:, :H] + gh[:, :H])
            z = jax.nn.sigmoid(gi[:, H:2 * H] + gh[:, H:2 * H])
            n = jnp.tanh(gi[:, 2 * H:] + r * gh[:, 2 * H:])
            h = (1.0 - z) * n + z * h
            outs.append(h)
        return jnp.stack(outs, axis=1), h

    hs = []
    inp = x
    for (w_ih, w_hh, b_ih, b_hh) in params:
        inp, hT = one_layer(inp, h0[len(hs)], w_ih, w_hh, b_ih, b_hh)
        hs.append(hT)
    return inp, jnp.stack(hs, axis=0)


def init_gru_params(key, input_size, hidden_size, num_layers):
    """U(-1/sqrt(H), 1/sqrt(H)) init, PyTorch weight shapes."""
    params = []
    bound = 1.0 / math.sqrt(hidden_size)
    for layer in range(num_layers):
        in_sz = input_size if layer == 0 else hidden_size
        key, k1, k2, k3, k4 = jax.random.split(key, 5)
        w_ih = jax.random.uniform(k1, (3 * hidden_size, in_sz), jnp.float32, -bound, bound)
        w_hh = jax.random.uniform(k2, (3 * hidden_size, hidden_size), jnp.float32, -bound, bound)
        b_ih = jax.random.uniform(k3, (3 * hidden_size,), jnp.float32, -bound, bound)
        b_hh = jax.random.uniform(k4, (3 * hidden_size,), jnp.float32, -bound, bound)
        params.append((w_ih, w_hh, b_ih, b_hh))
    return params


if __name__ == "__main__":
    batch, seq, input_size, hidden_size, num_layers = 2, 8, 16, 32, 2

    key = jax.random.PRNGKey(0)
    key, kx, kh, kp = jax.random.split(key, 4)
    x = jax.random.normal(kx, (batch, seq, input_size), jnp.float32)
    h0 = jax.random.normal(kh, (num_layers, batch, hidden_size), jnp.float32)
    params = init_gru_params(kp, input_size, hidden_size, num_layers)

    out, h = gru_forward(x, h0, params)
    jax.block_until_ready((out, h))

    assert out.shape == (batch, seq, hidden_size)
    assert h.shape == (num_layers, batch, hidden_size)

    # Sanity check vs pure-JAX f32 reference (kernel matmuls use bf16 operands and
    # gi is stored as bf16, so allow a small tolerance).
    out_ref, h_ref = gru_reference(x, h0, params)
    assert jnp.allclose(out, out_ref, atol=5e-2, rtol=5e-2)
    assert jnp.allclose(h, h_ref, atol=5e-2, rtol=5e-2)

    print("KERNEL_OK")
</pallas_src>

<mosaic_0001>
module attributes {stable_mosaic.version = 11 : i64} {
  func.func @_probe(%arg0: i32, %arg1: memref<8x128xf32, #tpu.memory_space<vmem>>, %arg2: memref<8x128xf32, #tpu.memory_space<vmem>>) attributes {dimension_semantics = [#tpu.dimension_semantics<arbitrary>], iteration_bounds = array<i64: 2>, scalar_prefetch = 0 : i64, scratch_operands = 0 : i64, tpu.core_type = #tpu.core_type<tc>, window_params = [{pipeline_mode = #tpu.pipeline_mode<synchronous>, transform_indices = @transform_0, window_bounds = array<i64: 8, 128>}, {pipeline_mode = #tpu.pipeline_mode<synchronous>, transform_indices = @transform_1, window_bounds = array<i64: 8, 128>}]} {
    %c0 = arith.constant 0 : index
    %c0_0 = arith.constant 0 : index
    %0 = vector.load %arg1[%c0, %c0_0] : memref<8x128xf32, #tpu.memory_space<vmem>>, vector<8x128xf32>
    %cst = arith.constant 1.000000e+00 : f32
    %1 = vector.broadcast %cst : f32 to vector<8x128xf32>
    %2 = arith.addf %0, %1 : vector<8x128xf32>
    %c0_1 = arith.constant 0 : index
    %c0_2 = arith.constant 0 : index
    %3 = vector.load %arg2[%c0_1, %c0_2] : memref<8x128xf32, #tpu.memory_space<vmem>>, vector<8x128xf32>
    tpu.vector_store %arg2[%c0_1, %c0_2], %2 {strides = array<i32>} : memref<8x128xf32, #tpu.memory_space<vmem>>, vector<8x128xf32>,
    return
  }
  func.func @transform_0(%arg0: i32) -> (i32, i32) {
    %c0_i32 = arith.constant 0 : i32
    %c0_i32_0 = arith.constant 0 : i32
    %c0_i32_1 = arith.constant 0 : i32
    return %c0_i32, %c0_i32_0 : i32, i32
  }
  func.func @transform_1(%arg0: i32) -> (i32, i32) {
    %c0_i32 = arith.constant 0 : i32
    %c0_i32_0 = arith.constant 0 : i32
    %c0_i32_1 = arith.constant 0 : i32
    return %c0_i32, %c0_i32_0 : i32, i32
  }
}

module attributes {stable_mosaic.version = 11 : i64} {
  func.func @_input_proj_kernel(%arg0: i32, %arg1: i32, %arg2: memref<64x128xf32, #tpu.memory_space<vmem>>, %arg3: memref<128x384xbf16, #tpu.memory_space<vmem>>, %arg4: memref<1x384xf32, #tpu.memory_space<vmem>>, %arg5: memref<64x384xbf16, #tpu.memory_space<vmem>>) attributes {dimension_semantics = [#tpu.dimension_semantics<parallel>, #tpu.dimension_semantics<parallel>], iteration_bounds = array<i64: 1, 1>, scalar_prefetch = 0 : i64, scratch_operands = 0 : i64, tpu.core_type = #tpu.core_type<tc>, window_params = [{transform_indices = @transform_0, window_bounds = array<i64: 64, 128>}, {transform_indices = @transform_1, window_bounds = array<i64: 128, 384>}, {transform_indices = @transform_2, window_bounds = array<i64: 1, 384>}, {transform_indices = @transform_3, window_bounds = array<i64: 64, 384>}]} {
    %c0 = arith.constant 0 : index
    %c0_0 = arith.constant 0 : index
    %0 = vector.load %arg2[%c0, %c0_0] : memref<64x128xf32, #tpu.memory_space<vmem>>, vector<64x128xf32>
    %1 = arith.truncf %0 : vector<64x128xf32> to vector<64x128xbf16>
    %c0_1 = arith.constant 0 : index
    %c0_2 = arith.constant 0 : index
    %2 = vector.load %arg3[%c0_1, %c0_2] : memref<128x384xbf16, #tpu.memory_space<vmem>>, vector<128x384xbf16>
    %cst = arith.constant dense<0.000000e+00> : vector<64x384xf32>
    %3 = tpu.matmul %1, %2, %cst {dimension_numbers = #tpu.dot_dimension_numbers<[1], [0], [0], [1], [0, 0, 1, 1], [], []>} : vector<64x128xbf16>, vector<128x384xbf16>, vector<64x384xf32> -> vector<64x384xf32>
    %c0_3 = arith.constant 0 : index
    %c0_4 = arith.constant 0 : index
    %4 = vector.load %arg4[%c0_3, %c0_4] : memref<1x384xf32, #tpu.memory_space<vmem>>, vector<1x384xf32>
    %5 = vector.broadcast %4 : vector<1x384xf32> to vector<64x384xf32>
    %6 = arith.addf %3, %5 : vector<64x384xf32>
    %7 = arith.truncf %6 : vector<64x384xf32> to vector<64x384xbf16>
    %c0_5 = arith.constant 0 : index
    %c0_6 = arith.constant 0 : index
    %8 = vector.load %arg5[%c0_5, %c0_6] : memref<64x384xbf16, #tpu.memory_space<vmem>>, vector<64x384xbf16>
    tpu.vector_store %arg5[%c0_5, %c0_6], %7 {strides = array<i32>} : memref<64x384xbf16, #tpu.memory_space<vmem>>, vector<64x384xbf16>,
    return
  }
  func.func @transform_0(%arg0: i32, %arg1: i32) -> (i32, i32) {
    %c0_i32 = arith.constant 0 : i32
    %c0_i32_0 = arith.constant 0 : i32
    return %arg1, %c0_i32 : i32, i32
  }
  func.func @transform_1(%arg0: i32, %arg1: i32) -> (i32, i32) {
    %c0_i32 = arith.constant 0 : i32
    %c0_i32_0 = arith.constant 0 : i32
    return %c0_i32, %arg0 : i32, i32
  }
  func.func @transform_2(%arg0: i32, %arg1: i32) -> (i32, i32) {
    %c0_i32 = arith.constant 0 : i32
    %c0_i32_0 = arith.constant 0 : i32
    return %c0_i32, %arg0 : i32, i32
  }
  func.func @transform_3(%arg0: i32, %arg1: i32) -> (i32, i32) {
    %c0_i32 = arith.constant 0 : i32
    return %arg1, %arg0 : i32, i32
  }
}

</mosaic_0001>

<llo_original>
// kernel: tpu_custom_call.1
$region0: #{tpu_custom_call.1}
  #allocation0 [shape = 'u32[]', space=smem, size = 0x4, offset = 0x4, fixed_abs, tag = 'smem constant byte address 0x4 - core index']
  #allocation1 [shape = 'u32[144,128]{1,0:T(1,128)}', space=vmem, size = 0x12000, scoped, tag = 'internal scratch']
  %s0 = inlined_call_operand.hbm [shape: f32[8,128], index: 0, kind: input, shape index: {}]
  %s1 = inlined_call_operand.hbm [shape: f32[8,128], index: 1, kind: output, shape index: {}]
  %s2 = sld [smem:[#allocation0]]
  $region41: #{tpu_custom_call.1} parent=0
    _
  %s4 = ssub.s32 1, %s2
  %s5 = scalar_select 0, %s4, %s2
  $region1: #{tpu_custom_call.1} parent=0
    #allocation2 [shape = 'u8[4096]{0}', space=vmem, size = 0x1000, scoped, tag = 'input window, operand 0, single buffered']
    #allocation3 [shape = 's32[2]{0}', space=sflag, size = 0x8, scoped, tag = 'scoped memory for tpu_custom_call.1']
    #allocation4 [shape = 's32[2]{0}', space=sflag, size = 0x8, scoped, tag = 'scoped memory for tpu_custom_call.1']
    #allocation5 [shape = 'u8[4096]{0}', space=vmem, size = 0x1000, scoped, tag = 'output window, operand 0, single buffered']
    %6 = vsyncpa [#allocation3], 0
    %7 = vsyncpa [#allocation4], 0
    loop: start=0, step=1, limit=4
    $region2: #{tpu_custom_call.1} parent=1 // loop_pre_header
      _
    $region3: #{tpu_custom_call.1} parent=1 // loop_header
      %s9 = sphi 0, %s13
      %p10 = scmp.ge.s32.totalorder %s9, 4
      %s17 = sphi 0, %s17
      %s19 = sphi 0, %s17
      %s20 = sphi 0, %s19
      %s34 = sphi 0, %s20
      %s38 = sphi 0, %s38
      %s40 = sphi 0, %s38
      %s41 = sphi 0, %s40
      %s55 = sphi 0, %s41
    $region4: #{tpu_custom_call.1} parent=1 // loop_header_branch
      %12 = sbr.rel (%p10) target = $region8
    $region5: #{tpu_custom_call.1} parent=1 // loop_body
      %s14 = ssub.s32 %s9, 1
      %s15 = ssub.s32 %s9, 2
      %s16 = sadd.s32 %s9, 1
      %s18 = sadd.s32 %s17, 1
      %p21 = scmp.eq.s32.totalorder %s9, 1
      %p22 = scmp.ne.s32.totalorder %s17, %s19
      %p23 = scmp.eq.s32.totalorder %s9, 0
      %p24 = por %p22, %p23
      %p25 = scmp.ne.s32.totalorder %s17, %s19
      %p26 = scmp.eq.s32.totalorder %s14, 1
      %p27 = por %p25, %p26
      %p28 = scmp.ne.s32.totalorder %s19, %s20
      %p29 = scmp.eq.s32.totalorder %s14, 0
      %p30 = por %p28, %p29
      %p31 = scmp.ne.s32.totalorder %s19, %s20
      %p32 = scmp.eq.s32.totalorder %s15, 1
      %p33 = por %p31, %p32
      %p35 = scmp.ne.s32.totalorder %s20, %s34
      %p36 = scmp.eq.s32.totalorder %s15, 0
      %p37 = por %p35, %p36
      %s39 = sadd.s32 %s38, 1
      %p42 = scmp.eq.s32.totalorder %s9, 1
      %p43 = scmp.ne.s32.totalorder %s38, %s40
      %p44 = scmp.eq.s32.totalorder %s9, 0
      %p45 = por %p43, %p44
      %p46 = scmp.ne.s32.totalorder %s38, %s40
      %p47 = scmp.eq.s32.totalorder %s14, 1
      %p48 = por %p46, %p47
      %p49 = scmp.ne.s32.totalorder %s40, %s41
      %p50 = scmp.eq.s32.totalorder %s14, 0
      %p51 = por %p49, %p50
      %p52 = scmp.ne.s32.totalorder %s40, %s41
      %p53 = scmp.eq.s32.totalorder %s15, 1
      %p54 = por %p52, %p53
      %p56 = scmp.ne.s32.totalorder %s41, %s55
      %p57 = scmp.eq.s32.totalorder %s15, 0
      %p58 = por %p56, %p57
      %p59 = scmp.le.s32.totalorder 1, %s9
      %p60 = scmp.lt.s32.totalorder %s9, 3
      %p61 = pnand %p59, %p60
      %p62 = pneg %p61
      // Predicated region
      $region9: #{tpu_custom_call.1} parent=5 // pred_check
        _
      $region10: #{tpu_custom_call.1} parent=5 // pred_check_branch
        %64 = sbr.rel (%p61) target = $region12
      $region11: #{tpu_custom_call.1} parent=5 // pred_region
        %s65 = ssub.s32 %s9, 1
        // Predicated region
        $region13: #{tpu_custom_call.1} parent=11 // pred_check
          %p66 = pneg %p30
        $region14: #{tpu_custom_call.1} parent=11 // pred_check_branch
          %68 = sbr.rel (%p66) target = $region16
        $region15: #{tpu_custom_call.1} parent=11 // pred_region
          %s70 = ssub.s32 128, 128
          %71 = vsyncadd [#allocation3], %s70
          %s73 = sshll.u32 [#allocation2], 4
          %s74 = int_to_ptr.vmem [resolvable:$true] %s73
          %76 = dma.hbm_to_vmem [thread:$0]  %s0, 128, %s74, [#allocation3]
        $region16: #{tpu_custom_call.1} parent=11 // pred_fallthru
          _
      $region12: #{tpu_custom_call.1} parent=5 // pred_fallthru
        _
      %p77 = scmp.lt.s32.totalorder %s9, 2
      // Predicated region
      $region17: #{tpu_custom_call.1} parent=5 // pred_check
        %p78 = pneg %p77
      $region18: #{tpu_custom_call.1} parent=5 // pred_check_branch
        %80 = sbr.rel (%p78) target = $region20
      $region19: #{tpu_custom_call.1} parent=5 // pred_region
        _
      $region20: #{tpu_custom_call.1} parent=5 // pred_fallthru
        _
      %p81 = scmp.le.s32.totalorder 1, %s9
      %p82 = scmp.lt.s32.totalorder %s9, 3
      %p83 = pnand %p81, %p82
      %p84 = pneg %p83
      // Predicated region
      $region21: #{tpu_custom_call.1} parent=5 // pred_check
        _
      $region22: #{tpu_custom_call.1} parent=5 // pred_check_branch
        %86 = sbr.rel (%p83) target = $region24
      $region23: #{tpu_custom_call.1} parent=5 // pred_region
        %s87 = ssub.s32 %s9, 1
        // Predicated region
        $region25: #{tpu_custom_call.1} parent=23 // pred_check
          %p88 = pneg %p30
        $region26: #{tpu_custom_call.1} parent=23 // pred_check_branch
          %90 = sbr.rel (%p88) target = $region28
        $region27: #{tpu_custom_call.1} parent=23 // pred_region
          %91 = dma.done [#allocation3], 128
        $region28: #{tpu_custom_call.1} parent=23 // pred_fallthru
          _
        %p92 = pneg %p30
        %p93 = pneg %p27
        %p94 = pneg %p51
        %p95 = pneg %p48
        %v96 = vld [vmem:[#allocation2] sm:$0xff]
        %v97 = vadd.f32 %v96, 1.0
        %98 = vst [vmem:[#allocation5] sm:$0xff] %v97
        // Predicated region
        $region29: #{tpu_custom_call.1} parent=23 // pred_check
          %p99 = pneg %p48
        $region30: #{tpu_custom_call.1} parent=23 // pred_check_branch
          %101 = sbr.rel (%p99) target = $region32
        $region31: #{tpu_custom_call.1} parent=23 // pred_region
          %s103 = ssub.s32 128, 128
          %104 = vsyncadd [#allocation4], %s103
          %s106 = sshll.u32 [#allocation5], 4
          %s107 = int_to_ptr.vmem [resolvable:$true] %s106
          %109 = dma.vmem_to_hbm [thread:$0]  %s107, 128, %s1, [#allocation4]
        $region32: #{tpu_custom_call.1} parent=23 // pred_fallthru
          _
        // Predicated region
        $region33: #{tpu_custom_call.1} parent=23 // pred_check
          %p110 = pneg %p48
        $region34: #{tpu_custom_call.1} parent=23 // pred_check_branch
          %112 = sbr.rel (%p110) target = $region36
        $region35: #{tpu_custom_call.1} parent=23 // pred_region
          %113 = dma.done [#allocation4], 128
        $region36: #{tpu_custom_call.1} parent=23 // pred_fallthru
          _
      $region24: #{tpu_custom_call.1} parent=5 // pred_fallthru
        _
      %p114 = scmp.le.s32.totalorder 2, %s9
      // Predicated region
      $region37: #{tpu_custom_call.1} parent=5 // pred_check
        %p115 = pneg %p114
      $region38: #{tpu_custom_call.1} parent=5 // pred_check_branch
        %117 = sbr.rel (%p115) target = $region40
      $region39: #{tpu_custom_call.1} parent=5 // pred_region
        %s118 = ssub.s32 %s9, 2
      $region40: #{tpu_custom_call.1} parent=5 // pred_fallthru
        _
    $region6: #{tpu_custom_call.1} parent=1 // loop_footer
      %s13 = sadd.s32 1, %s9
    $region7: #{tpu_custom_call.1} parent=1 // loop_footer_branch
      %8 = sbr.rel target = $region3
    $region8: #{tpu_custom_call.1} parent=1 // loop_exit
      _
    %119 = vsyncpa [#allocation3], 1
    %s120 = scalar_lea.sflag [#allocation3], 1
    %121 = vsyncpa %s120, 1
    %122 = vsyncpa [#allocation4], 1
    %s123 = scalar_lea.sflag [#allocation4], 1
    %124 = vsyncpa %s123, 1

// kernel: tpu_custom_call.1
$region0: #{tpu_custom_call.1}
  #allocation0 [shape = 'u32[]', space=smem, size = 0x4, offset = 0x4, fixed_abs, tag = 'smem constant byte address 0x4 - core index']
  #allocation1 [shape = 'u32[144,128]{1,0:T(1,128)}', space=vmem, size = 0x12000, scoped, tag = 'internal scratch']
  %s0 = inlined_call_operand.hbm [shape: f32[64,128], index: 0, kind: input, shape index: {}]
  %s1 = inlined_call_operand.hbm [shape: bf16[128,384], index: 1, kind: input, shape index: {}]
  %s2 = inlined_call_operand.vmem [shape: f32[1,384], index: 2, kind: input, shape index: {}]
  %s3 = inlined_call_operand.hbm [shape: bf16[64,384], index: 3, kind: output, shape index: {}]
  %s4 = sld [smem:[#allocation0]]
  $region30: #{tpu_custom_call.1} parent=0
    _
  %s6 = ssub.s32 1, %s4
  %s7 = scalar_select 0, %s6, %s4
  $region1: #{tpu_custom_call.1} parent=0
    #allocation2 [shape = 'u8[32768]{0}', space=vmem, size = 0x8000, scoped, tag = 'input window, operand 0, single buffered']
    #allocation3 [shape = 's32[1]{0}', space=sflag, size = 0x4, scoped, tag = 'scoped memory for tpu_custom_call.1']
    #allocation4 [shape = 's32[1]{0}', space=sflag, size = 0x4, scoped, tag = 'scoped memory for tpu_custom_call.1']
    #allocation5 [shape = 'u8[98304]{0}', space=vmem, size = 0x18000, scoped, tag = 'input window, operand 1, single buffered']
    #allocation6 [shape = 's32[1]{0}', space=sflag, size = 0x4, scoped, tag = 'scoped memory for tpu_custom_call.1']
    #allocation7 [shape = 'u8[49152]{0}', space=vmem, size = 0xc000, scoped, tag = 'output window, operand 0, single buffered']
    %8 = vsyncpa [#allocation3], 0
    %9 = vsyncpa [#allocation6], 0
    %10 = vsyncpa [#allocation4], 0
    // Predicated region
    $region2: #{tpu_custom_call.1} parent=1 // pred_check
      _
    $region3: #{tpu_custom_call.1} parent=1 // pred_check_branch
      %12 = sbr.rel (0) target = $region5
    $region4: #{tpu_custom_call.1} parent=1 // pred_region
      %s14 = ssub.s32 1024, 1024
      %15 = vsyncadd [#allocation3], %s14
      %s16 = sshll.u32 [#allocation2], 4
      %s17 = int_to_ptr.vmem [resolvable:$true] %s16
      %22 = dma.hbm_to_vmem [thread:$0]  %s0, 1024, %s17, [#allocation3], 128, 128, 8
    $region5: #{tpu_custom_call.1} parent=1 // pred_fallthru
      _
    // Predicated region
    $region6: #{tpu_custom_call.1} parent=1 // pred_check
      _
    $region7: #{tpu_custom_call.1} parent=1 // pred_check_branch
      %24 = sbr.rel (0) target = $region9
    $region8: #{tpu_custom_call.1} parent=1 // pred_region
      %s26 = ssub.s32 3072, 3072
      %27 = vsyncadd [#allocation6], %s26
      %s28 = sshll.u32 [#allocation5], 4
      %s29 = int_to_ptr.vmem [resolvable:$true] %s28
      %34 = dma.hbm_to_vmem [thread:$0]  %s1, 3072, %s29, [#allocation6], 192, 192, 12
    $region9: #{tpu_custom_call.1} parent=1 // pred_fallthru
      _
    // Predicated region
    $region10: #{tpu_custom_call.1} parent=1 // pred_check
      _
    $region11: #{tpu_custom_call.1} parent=1 // pred_check_branch
      %36 = sbr.rel (0) target = $region13
    $region12: #{tpu_custom_call.1} parent=1 // pred_region
      _
    $region13: #{tpu_custom_call.1} parent=1 // pred_fallthru
      _
    // Predicated region
    $region14: #{tpu_custom_call.1} parent=1 // pred_check
      _
    $region15: #{tpu_custom_call.1} parent=1 // pred_check_branch
      %38 = sbr.rel (0) target = $region17
    $region16: #{tpu_custom_call.1} parent=1 // pred_region
      %39 = dma.done [#allocation3], 1024
    $region17: #{tpu_custom_call.1} parent=1 // pred_fallthru
      _
    // Predicated region
    $region18: #{tpu_custom_call.1} parent=1 // pred_check
      _
    $region19: #{tpu_custom_call.1} parent=1 // pred_check_branch
      %41 = sbr.rel (0) target = $region21
    $region20: #{tpu_custom_call.1} parent=1 // pred_region
      %42 = dma.done [#allocation6], 3072
    $region21: #{tpu_custom_call.1} parent=1 // pred_fallthru
      _
    %v44 = vld [vmem:[#allocation2] sm:$0xff]
    %v45 = vld [vmem:[#allocation2 + $0x8] sm:$0xff]
    %v46 = vld [vmem:[#allocation2 + $0x10] sm:$0xff]
    %v47 = vld [vmem:[#allocation2 + $0x18] sm:$0xff]
    %v48 = vld [vmem:[#allocation2 + $0x20] sm:$0xff]
    %v49 = vld [vmem:[#allocation2 + $0x28] sm:$0xff]
    %v50 = vld [vmem:[#allocation2 + $0x30] sm:$0xff]
    %v51 = vld [vmem:[#allocation2 + $0x38] sm:$0xff]
    %v52 = vpack.c.bf16 %v45, %v44
    %v53 = vpack.c.bf16 %v47, %v46
    %v54 = vpack.c.bf16 %v49, %v48
    %v55 = vpack.c.bf16 %v51, %v50
    %v56 = vld [vmem:[#allocation5] sm:$0xff]
    %v57 = vld [vmem:[#allocation5 + $0x8] sm:$0xf]
    %v58 = vld [vmem:[#allocation5 + $0xc] sm:$0xff]
    %v59 = vld [vmem:[#allocation5 + $0x14] sm:$0xf]
    %v60 = vld [vmem:[#allocation5 + $0x18] sm:$0xff]
    %v61 = vld [vmem:[#allocation5 + $0x20] sm:$0xf]
    %v62 = vld [vmem:[#allocation5 + $0x24] sm:$0xff]
    %v63 = vld [vmem:[#allocation5 + $0x2c] sm:$0xf]
    %v64 = vld [vmem:[#allocation5 + $0x30] sm:$0xff]
    %v65 = vld [vmem:[#allocation5 + $0x38] sm:$0xf]
    %v66 = vld [vmem:[#allocation5 + $0x3c] sm:$0xff]
    %v67 = vld [vmem:[#allocation5 + $0x44] sm:$0xf]
    %v68 = vld [vmem:[#allocation5 + $0x48] sm:$0xff]
    %v69 = vld [vmem:[#allocation5 + $0x50] sm:$0xf]
    %v70 = vld [vmem:[#allocation5 + $0x54] sm:$0xff]
    %v71 = vld [vmem:[#allocation5 + $0x5c] sm:$0xf]
    %v72 = vld [vmem:[#allocation5 + $0x60] sm:$0xff]
    %v73 = vld [vmem:[#allocation5 + $0x68] sm:$0xf]
    %v74 = vld [vmem:[#allocation5 + $0x6c] sm:$0xff]
    %v75 = vld [vmem:[#allocation5 + $0x74] sm:$0xf]
    %v76 = vld [vmem:[#allocation5 + $0x78] sm:$0xff]
    %v77 = vld [vmem:[#allocation5 + $0x80] sm:$0xf]
    %v78 = vld [vmem:[#allocation5 + $0x84] sm:$0xff]
    %v79 = vld [vmem:[#allocation5 + $0x8c] sm:$0xf]
    %v80 = vld [vmem:[#allocation5 + $0x90] sm:$0xff]
    %v81 = vld [vmem:[#allocation5 + $0x98] sm:$0xf]
    %v82 = vld [vmem:[#allocation5 + $0x9c] sm:$0xff]
    %v83 = vld [vmem:[#allocation5 + $0xa4] sm:$0xf]
    %v84 = vld [vmem:[#allocation5 + $0xa8] sm:$0xff]
    %v85 = vld [vmem:[#allocation5 + $0xb0] sm:$0xf]
    %v86 = vld [vmem:[#allocation5 + $0xb4] sm:$0xff]
    %v87 = vld [vmem:[#allocation5 + $0xbc] sm:$0xf]
    %v88 = vld [vmem:[%s2] sm:$0x7]
    %v90 = vlaneseq
    %v91 = vshrl.u32 %v90, 7
    %v92 = vsub.s32 0, %v91
    %v93 = vrot.slane %v88, %v92
    %v94 = vlaneseq
    %v95 = vshrl.u32 %v94, 7
    %v96 = vsub.s32 1, %v95
    %v97 = vrot.slane %v88, %v96
    %v98 = vlaneseq
    %v99 = vshrl.u32 %v98, 7
    %v100 = vsub.s32 2, %v99
    %v101 = vrot.slane %v88, %v100
    %v137 = vunpack.c.l.b16 %v56
    %v138 = vunpack.c.h.b16 %v56
    %v139 = vunpack.c.l.b16 %v57
    %v140 = vunpack.c.l.b16 %v58
    %v141 = vunpack.c.h.b16 %v58
    %v142 = vunpack.c.l.b16 %v59
    %v143 = vunpack.c.l.b16 %v60
    %v144 = vunpack.c.h.b16 %v60
    %v145 = vunpack.c.l.b16 %v61
    %v146 = vunpack.c.l.b16 %v62
    %v147 = vunpack.c.h.b16 %v62
    %v148 = vunpack.c.l.b16 %v63
    %v149 = vunpack.c.l.b16 %v64
    %v150 = vunpack.c.h.b16 %v64
    %v151 = vunpack.c.l.b16 %v65
    %v152 = vunpack.c.l.b16 %v66
    %v153 = vunpack.c.h.b16 %v66
    %v154 = vunpack.c.l.b16 %v67
    %v155 = vunpack.c.l.b16 %v68
    %v156 = vunpack.c.h.b16 %v68
    %v157 = vunpack.c.l.b16 %v69
    %v158 = vunpack.c.l.b16 %v70
    %v159 = vunpack.c.h.b16 %v70
    %v160 = vunpack.c.l.b16 %v71
    %v161 = vunpack.c.l.b16 %v72
    %v162 = vunpack.c.h.b16 %v72
    %v163 = vunpack.c.l.b16 %v73
    %v164 = vunpack.c.l.b16 %v74
    %v165 = vunpack.c.h.b16 %v74
    %v166 = vunpack.c.l.b16 %v75
    %v167 = vunpack.c.l.b16 %v76
    %v168 = vunpack.c.h.b16 %v76
    %v169 = vunpack.c.l.b16 %v77
    %v170 = vunpack.c.l.b16 %v78
    %v171 = vunpack.c.h.b16 %v78
    %v172 = vunpack.c.l.b16 %v79
    %v173 = vunpack.c.l.b16 %v80
    %v174 = vunpack.c.h.b16 %v80
    %v175 = vunpack.c.l.b16 %v81
    %v176 = vunpack.c.l.b16 %v82
    %v177 = vunpack.c.h.b16 %v82
    %v178 = vunpack.c.l.b16 %v83
    %v179 = vunpack.c.l.b16 %v84
    %v180 = vunpack.c.h.b16 %v84
    %v181 = vunpack.c.l.b16 %v85
    %v182 = vunpack.c.l.b16 %v86
    %v183 = vunpack.c.h.b16 %v86
    %v184 = vunpack.c.l.b16 %v87
    %v185 = vpack.c.b16 %v140, %v137
    %v186 = vpack.c.b16 %v141, %v138
    %v187 = vpack.c.b16 %v142, %v139
    %v188 = vpack.c.b16 %v146, %v143
    %v189 = vpack.c.b16 %v147, %v144
    %v190 = vpack.c.b16 %v148, %v145
    %v191 = vpack.c.b16 %v152, %v149
    %v192 = vpack.c.b16 %v153, %v150
    %v193 = vpack.c.b16 %v154, %v151
    %v194 = vpack.c.b16 %v158, %v155
    %v195 = vpack.c.b16 %v159, %v156
    %v196 = vpack.c.b16 %v160, %v157
    %v197 = vpack.c.b16 %v164, %v161
    %v198 = vpack.c.b16 %v165, %v162
    %v199 = vpack.c.b16 %v166, %v163
    %v200 = vpack.c.b16 %v170, %v167
    %v201 = vpack.c.b16 %v171, %v168
    %v202 = vpack.c.b16 %v172, %v169
    %v203 = vpack.c.b16 %v176, %v173
    %v204 = vpack.c.b16 %v177, %v174
    %v205 = vpack.c.b16 %v178, %v175
    %v206 = vpack.c.b16 %v182, %v179
    %v207 = vpack.c.b16 %v183, %v180
    %v208 = vpack.c.b16 %v184, %v181
    %233 = vmatprep.subr.bf16.mxu0 %v186
    %234 = vmatpush1.bf16.msra.mxu0 %v185
    %235 = vmatprep.subr.bf16.mxu0 %v189
    %236 = vmatpush1.bf16.msra.mxu0 %v188
    %237 = vmatprep.subr.bf16.mxu0 %v192
    %238 = vmatpush1.bf16.msra.mxu0 %v191
    %239 = vmatprep.subr.bf16.mxu0 %v195
    %240 = vmatpush1.bf16.msra.mxu0 %v194
    %241 = vmatprep.subr.bf16.mxu0 %v198
    %242 = vmatpush1.bf16.msra.mxu0 %v197
    %243 = vmatprep.subr.bf16.mxu0 %v201
    %244 = vmatpush1.bf16.msra.mxu0 %v200
    %245 = vmatprep.subr.bf16.mxu0 %v204
    %246 = vmatpush1.bf16.msra.mxu0 %v203
    %247 = vmatprep.subr.bf16.mxu0 %v207
    %248 = vmatpush1.bf16.msra.mxu0 %v206
    %249 = vmatprep.subr.bf16.mxu0 0
    %250 = vmatpush1.bf16.msra.mxu0 0
    %251 = vmatprep.subr.bf16.mxu0 0
    %252 = vmatpush1.bf16.msra.mxu0 0
    %253 = vmatprep.subr.bf16.mxu0 0
    %254 = vmatpush1.bf16.msra.mxu0 0
    %255 = vmatprep.subr.bf16.mxu0 0
    %256 = vmatpush1.bf16.msra.mxu0 0
    %257 = vmatprep.subr.bf16.mxu0 0
    %258 = vmatpush1.bf16.msra.mxu0 0
    %259 = vmatprep.subr.bf16.mxu0 0
    %260 = vmatpush1.bf16.msra.mxu0 0
    %261 = vmatprep.subr.bf16.mxu0 0
    %262 = vmatpush1.bf16.msra.mxu0 0
    %263 = vmatprep.subr.bf16.mxu0 0
    %264 = vmatpush1.bf16.msra.mxu0 0
    %265 = vmatprep.mubr.bf16.mxu0 0
    %266 = vmatmul.mubr.bf16.gmra.mrb[0].mxu0 %v52
    %v267 = vpop.f32.mrb[0].mxu0
    %v268 = vadd.f32 %v93, %v267
    %v269 = vpop.f32.mrb[0].mxu0
    %v270 = vadd.f32 %v97, %v269
    %v271 = vpop.f32.mrb[0].mxu0
    %v272 = vadd.f32 %v93, %v271
    %v273 = vpop.f32.mrb[0].mxu0
    %v274 = vadd.f32 %v97, %v273
    %275 = vmatprep.mubr.bf16.mxu0 0
    %276 = vmatmul.mubr.bf16.gmra.mrb[0].mxu0 %v53
    %v277 = vpop.f32.mrb[0].mxu0
    %v278 = vadd.f32 %v93, %v277
    %v279 = vpop.f32.mrb[0].mxu0
    %v280 = vadd.f32 %v97, %v279
    %v281 = vpop.f32.mrb[0].mxu0
    %v282 = vadd.f32 %v93, %v281
    %v283 = vpop.f32.mrb[0].mxu0
    %v284 = vadd.f32 %v97, %v283
    %285 = vmatprep.mubr.bf16.mxu0 0
    %286 = vmatmul.mubr.bf16.gmra.mrb[0].mxu0 %v54
    %v287 = vpop.f32.mrb[0].mxu0
    %v288 = vadd.f32 %v93, %v287
    %v289 = vpop.f32.mrb[0].mxu0
    %v290 = vadd.f32 %v97, %v289
    %v291 = vpop.f32.mrb[0].mxu0
    %v292 = vadd.f32 %v93, %v291
    %v293 = vpop.f32.mrb[0].mxu0
    %v294 = vadd.f32 %v97, %v293
    %295 = vmatprep.mubr.bf16.mxu0 0
    %296 = vmatmul.mubr.bf16.gmra.mrb[0].mxu0 %v55
    %v297 = vpop.f32.mrb[0].mxu0
    %v298 = vadd.f32 %v93, %v297
    %v299 = vpop.f32.mrb[0].mxu0
    %v300 = vadd.f32 %v97, %v299
    %v301 = vpop.f32.mrb[0].mxu0
    %v302 = vadd.f32 %v93, %v301
    %v303 = vpop.f32.mrb[0].mxu0
    %v304 = vadd.f32 %v97, %v303
    %305 = vdwg.mxu0
    %306 = vmatprep.subr.bf16.mxu0 0
    %307 = vmatpush1.bf16.msra.mxu0 %v187
    %308 = vmatprep.subr.bf16.mxu0 0
    %309 = vmatpush1.bf16.msra.mxu0 %v190
    %310 = vmatprep.subr.bf16.mxu0 0
    %311 = vmatpush1.bf16.msra.mxu0 %v193
    %312 = vmatprep.subr.bf16.mxu0 0
    %313 = vmatpush1.bf16.msra.mxu0 %v196
    %314 = vmatprep.subr.bf16.mxu0 0
    %315 = vmatpush1.bf16.msra.mxu0 %v199
    %316 = vmatprep.subr.bf16.mxu0 0
    %317 = vmatpush1.bf16.msra.mxu0 %v202
    %318 = vmatprep.subr.bf16.mxu0 0
    %319 = vmatpush1.bf16.msra.mxu0 %v205
    %320 = vmatprep.subr.bf16.mxu0 0
    %321 = vmatpush1.bf16.msra.mxu0 %v208
    %322 = vmatprep.subr.bf16.mxu0 0
    %323 = vmatpush1.bf16.msra.mxu0 0
    %324 = vmatprep.subr.bf16.mxu0 0
    %325 = vmatpush1.bf16.msra.mxu0 0
    %326 = vmatprep.subr.bf16.mxu0 0
    %327 = vmatpush1.bf16.msra.mxu0 0
    %328 = vmatprep.subr.bf16.mxu0 0
    %329 = vmatpush1.bf16.msra.mxu0 0
    %330 = vmatprep.subr.bf16.mxu0 0
    %331 = vmatpush1.bf16.msra.mxu0 0
    %332 = vmatprep.subr.bf16.mxu0 0
    %333 = vmatpush1.bf16.msra.mxu0 0
    %334 = vmatprep.subr.bf16.mxu0 0
    %335 = vmatpush1.bf16.msra.mxu0 0
    %336 = vmatprep.subr.bf16.mxu0 0
    %337 = vmatpush1.bf16.msra.mxu0 0
    %338 = vmatprep.mubr.bf16.mxu0 0
    %339 = vmatmul.mubr.bf16.gmra.mrb[0].mxu0 %v52
    %v340 = vpop.f32.mrb[0].mxu0
    %v341 = vadd.f32 %v101, %v340
    %v342 = vpop.f32.mrb[0].mxu0
    %v343 = vpop.f32.mrb[0].mxu0
    %v344 = vadd.f32 %v101, %v343
    %v345 = vpop.f32.mrb[0].mxu0
    %346 = vmatprep.mubr.bf16.mxu0 0
    %347 = vmatmul.mubr.bf16.gmra.mrb[0].mxu0 %v53
    %v348 = vpop.f32.mrb[0].mxu0
    %v349 = vadd.f32 %v101, %v348
    %v350 = vpop.f32.mrb[0].mxu0
    %v351 = vpop.f32.mrb[0].mxu0
    %v352 = vadd.f32 %v101, %v351
    %v353 = vpop.f32.mrb[0].mxu0
    %354 = vmatprep.mubr.bf16.mxu0 0
    %355 = vmatmul.mubr.bf16.gmra.mrb[0].mxu0 %v54
    %v356 = vpop.f32.mrb[0].mxu0
    %v357 = vadd.f32 %v101, %v356
    %v358 = vpop.f32.mrb[0].mxu0
    %v359 = vpop.f32.mrb[0].mxu0
    %v360 = vadd.f32 %v101, %v359
    %v361 = vpop.f32.mrb[0].mxu0
    %362 = vmatprep.mubr.bf16.mxu0 0
    %363 = vmatmul.mubr.bf16.gmra.mrb[0].mxu0 %v55
    %v364 = vpop.f32.mrb[0].mxu0
    %v365 = vadd.f32 %v101, %v364
    %v366 = vpop.f32.mrb[0].mxu0
    %v367 = vpop.f32.mrb[0].mxu0
    %v368 = vadd.f32 %v101, %v367
    %v369 = vpop.f32.mrb[0].mxu0
    %370 = vdwg.mxu0
    %v371 = vpack.c.bf16 %v272, %v268
    %v372 = vpack.c.bf16 %v274, %v270
    %v373 = vpack.c.bf16 %v344, %v341
    %v374 = vpack.c.bf16 %v282, %v278
    %v375 = vpack.c.bf16 %v284, %v280
    %v376 = vpack.c.bf16 %v352, %v349
    %v377 = vpack.c.bf16 %v292, %v288
    %v378 = vpack.c.bf16 %v294, %v290
    %v379 = vpack.c.bf16 %v360, %v357
    %v380 = vpack.c.bf16 %v302, %v298
    %v381 = vpack.c.bf16 %v304, %v300
    %v382 = vpack.c.bf16 %v368, %v365
    %v395 = vunpack.c.l.b16 %v371
    %v396 = vunpack.c.l.b16 %v372
    %v397 = vunpack.c.l.b16 %v373
    %v398 = vunpack.c.h.b16 %v371
    %v399 = vunpack.c.h.b16 %v372
    %v400 = vunpack.c.h.b16 %v373
    %v401 = vunpack.c.l.b16 %v374
    %v402 = vunpack.c.l.b16 %v375
    %v403 = vunpack.c.l.b16 %v376
    %v404 = vunpack.c.h.b16 %v374
    %v405 = vunpack.c.h.b16 %v375
    %v406 = vunpack.c.h.b16 %v376
    %v407 = vunpack.c.l.b16 %v377
    %v408 = vunpack.c.l.b16 %v378
    %v409 = vunpack.c.l.b16 %v379
    %v410 = vunpack.c.h.b16 %v377
    %v411 = vunpack.c.h.b16 %v378
    %v412 = vunpack.c.h.b16 %v379
    %v413 = vunpack.c.l.b16 %v380
    %v414 = vunpack.c.l.b16 %v381
    %v415 = vunpack.c.l.b16 %v382
    %v416 = vunpack.c.h.b16 %v380
    %v417 = vunpack.c.h.b16 %v381
    %v418 = vunpack.c.h.b16 %v382
    %v419 = vpack.c.b16 %v396, %v395
    %v420 = vpack.c.b16 %v397, %v397
    %v421 = vpack.c.b16 %v399, %v398
    %v422 = vpack.c.b16 %v400, %v400
    %v423 = vpack.c.b16 %v402, %v401
    %v424 = vpack.c.b16 %v403, %v403
    %v425 = vpack.c.b16 %v405, %v404
    %v426 = vpack.c.b16 %v406, %v406
    %v427 = vpack.c.b16 %v408, %v407
    %v428 = vpack.c.b16 %v409, %v409
    %v429 = vpack.c.b16 %v411, %v410
    %v430 = vpack.c.b16 %v412, %v412
    %v431 = vpack.c.b16 %v414, %v413
    %v432 = vpack.c.b16 %v415, %v415
    %v433 = vpack.c.b16 %v417, %v416
    %v434 = vpack.c.b16 %v418, %v418
    %451 = vst [vmem:[#allocation7] sm:$0xff] %v419
    %452 = vst [vmem:[#allocation7 + $0x8] sm:$0xf] %v420
    %453 = vst [vmem:[#allocation7 + $0xc] sm:$0xff] %v421
    %454 = vst [vmem:[#allocation7 + $0x14] sm:$0xf] %v422
    %455 = vst [vmem:[#allocation7 + $0x18] sm:$0xff] %v423
    %456 = vst [vmem:[#allocation7 + $0x20] sm:$0xf] %v424
    %457 = vst [vmem:[#allocation7 + $0x24] sm:$0xff] %v425
    %458 = vst [vmem:[#allocation7 + $0x2c] sm:$0xf] %v426
    %459 = vst [vmem:[#allocation7 + $0x30] sm:$0xff] %v427
    %460 = vst [vmem:[#allocation7 + $0x38] sm:$0xf] %v428
    %461 = vst [vmem:[#allocation7 + $0x3c] sm:$0xff] %v429
    %462 = vst [vmem:[#allocation7 + $0x44] sm:$0xf] %v430
    %463 = vst [vmem:[#allocation7 + $0x48] sm:$0xff] %v431
    %464 = vst [vmem:[#allocation7 + $0x50] sm:$0xf] %v432
    %465 = vst [vmem:[#allocation7 + $0x54] sm:$0xff] %v433
    %466 = vst [vmem:[#allocation7 + $0x5c] sm:$0xf] %v434
    // Predicated region
    $region22: #{tpu_custom_call.1} parent=1 // pred_check
      _
    $region23: #{tpu_custom_call.1} parent=1 // pred_check_branch
      %468 = sbr.rel (0) target = $region25
    $region24: #{tpu_custom_call.1} parent=1 // pred_region
      %s470 = ssub.s32 1536, 1536
      %471 = vsyncadd [#allocation4], %s470
      %s472 = sshll.u32 [#allocation7], 4
      %s473 = int_to_ptr.vmem [resolvable:$true] %s472
      %478 = dma.vmem_to_hbm [thread:$0]  %s473, 1536, %s3, [#allocation4], 192, 192, 12
    $region25: #{tpu_custom_call.1} parent=1 // pred_fallthru
      _
    // Predicated region
    $region26: #{tpu_custom_call.1} parent=1 // pred_check
      _
    $region27: #{tpu_custom_call.1} parent=1 // pred_check_branch
      %480 = sbr.rel (0) target = $region29
    $region28: #{tpu_custom_call.1} parent=1 // pred_region
      %481 = dma.done [#allocation4], 1536
    $region29: #{tpu_custom_call.1} parent=1 // pred_fallthru
      _
    %482 = vsyncpa [#allocation3], 1
    %483 = vsyncpa [#allocation6], 1
    %484 = vsyncpa [#allocation4], 1

</llo_original>
